<compile_context>
chip_gen: v7x
topology: tpu7x:2x2x1
jax: 0.10.0
libtpu: 0.0.40
codegen_flags: <defaults>
</compile_context>

<pallas_src>
import jax
import jax.numpy as jnp
from jax import lax
from jax.experimental import pallas as pl
from jax.experimental.pallas import tpu as pltpu

STATE_DIM = 288
ACTION_DIM = 12
ACT_PAD = 16          # action table rows padded 12 -> 16 (sublane multiple)
IN_DIM = STATE_DIM + ACTION_DIM  # 300
HIDDEN = 256
OUT_DIM = 288


def _round_up(x, m):
    return ((x + m - 1) // m) * m


def _fnet_kernel(state_ref, act_ref, tab_ref, w1s_ref, w2_ref, b2_ref, out_ref):
    # state_ref : (BM, 288)  f32   batch tile of the state (cast to bf16 here)
    # act_ref   : (BM, 1)    i32   raw action indices
    # tab_ref   : (16, 256)  f32   resident (W1_action + b1), rows 12..15 zero
    # w1s_ref   : (288, 256) bf16  state rows of W1, laid out (in, out)
    # w2_ref    : (256, 288) bf16  W2
    # b2_ref    : (1, 288)   f32   b2
    # out_ref   : (BM, 288)  f32
    bm = state_ref.shape[0]

    x = state_ref[...].astype(jnp.bfloat16)                       # free VPU cast
    h = jnp.dot(x, w1s_ref[...],
                preferred_element_type=jnp.float32)                # (BM, 256) f32

    # In-kernel one-hot against the tiny resident table: (BM,16) x (16,256).
    iota = lax.broadcasted_iota(jnp.int32, (bm, ACT_PAD), 1)
    onehot = (iota == act_ref[...]).astype(jnp.float32)            # (BM, 16)
    act_bias = jnp.dot(onehot, tab_ref[...],
                       preferred_element_type=jnp.float32)         # (BM, 256)

    h = jnp.maximum(h + act_bias, 0.0)                             # bias + ReLU
    y = jnp.dot(h.astype(w2_ref.dtype), w2_ref[...],
                preferred_element_type=jnp.float32)                # (BM, 288)
    out_ref[...] = (y + b2_ref[...]).astype(out_ref.dtype)


def fnet_forward(state, action, w1, b1, w2, b2):
    """state: (B, 288) f32, action: (B, 1) int.
    w1: (300, 256), b1: (256,), w2: (256, 288), b2: (288,) — all (in, out)."""
    assert state.ndim == 2 and state.shape[1] == STATE_DIM
    assert action.ndim == 2 and action.shape[1] == 1, "action must be (B, 1)"
    B = state.shape[0]
    action = action.astype(jnp.int32)

    # Batch tile: multiple of 8 rows, <= 1024, and <= ceil(B/2) so large
    # batches always produce >= 2 grid steps (uses both v7x TensorCores).
    BM = min(1024, _round_up(max(pl.cdiv(B, 2), 1), 8))
    grid = (pl.cdiv(B, BM),)

    # Tiny host-side prep (weights only; no per-row batch passes).
    act_table = jnp.zeros((ACT_PAD, HIDDEN), jnp.float32)
    act_table = act_table.at[:ACTION_DIM].set(w1[STATE_DIM:] + b1[None, :])
    w1_state = w1[:STATE_DIM].astype(jnp.bfloat16)                 # (288, 256)
    w2_bf = w2.astype(jnp.bfloat16)                                # (256, 288)
    b2_row = b2.reshape(1, OUT_DIM).astype(jnp.float32)            # (1, 288)

    flops = 2 * B * (STATE_DIM * HIDDEN + ACT_PAD * HIDDEN + HIDDEN * OUT_DIM)
    bytes_accessed = (
        B * STATE_DIM * 4                # state (f32, cast in-kernel)
        + B * 4                          # action (i32)
        + ACT_PAD * HIDDEN * 4           # act table (f32, resident)
        + STATE_DIM * HIDDEN * 2         # W1s (bf16, resident)
        + HIDDEN * OUT_DIM * 2           # W2  (bf16, resident)
        + OUT_DIM * 4                    # b2
        + B * OUT_DIM * 4                # output (f32)
    )

    out = pl.pallas_call(
        _fnet_kernel,
        out_shape=jax.ShapeDtypeStruct((B, OUT_DIM), jnp.float32),
        grid=grid,
        in_specs=[
            pl.BlockSpec((BM, STATE_DIM), lambda i: (i, 0)),       # state tile
            pl.BlockSpec((BM, 1), lambda i: (i, 0)),               # action tile
            pl.BlockSpec((ACT_PAD, HIDDEN), lambda i: (0, 0)),     # act table (resident)
            pl.BlockSpec((STATE_DIM, HIDDEN), lambda i: (0, 0)),   # W1s (resident)
            pl.BlockSpec((HIDDEN, OUT_DIM), lambda i: (0, 0)),     # W2  (resident)
            pl.BlockSpec((1, OUT_DIM), lambda i: (0, 0)),          # b2  (resident)
        ],
        out_specs=pl.BlockSpec((BM, OUT_DIM), lambda i: (i, 0)),
        compiler_params=pltpu.CompilerParams(
            dimension_semantics=("parallel",)),
        cost_estimate=pl.CostEstimate(
            flops=flops, transcendentals=0, bytes_accessed=bytes_accessed),
    )(state, action, act_table, w1_state, w2_bf, b2_row)

    return out


def _init_linear(key, fan_in, fan_out):
    # Mimic PyTorch nn.Linear default init: U(-1/sqrt(fan_in), 1/sqrt(fan_in)).
    kw, kb = jax.random.split(key)
    bound = 1.0 / jnp.sqrt(fan_in)
    w = jax.random.uniform(kw, (fan_in, fan_out), jnp.float32, -bound, bound)
    b = jax.random.uniform(kb, (fan_out,), jnp.float32, -bound, bound)
    return w, b


def _reference(state, action, w1, b1, w2, b2):
    one_hot = jax.nn.one_hot(action[:, 0], ACTION_DIM, dtype=state.dtype)
    x = jnp.concatenate([state, one_hot], axis=1)
    h = jnp.maximum(x @ w1 + b1, 0.0)
    return h @ w2 + b2


if __name__ == "__main__":
    key = jax.random.PRNGKey(0)
    k_state, k_action, k_l1, k_l2 = jax.random.split(key, 4)

    w1, b1 = _init_linear(k_l1, IN_DIM, HIDDEN)
    w2, b2 = _init_linear(k_l2, HIDDEN, OUT_DIM)

    # Main check (B divisible by the batch tile).
    B = 8
    state = jax.random.normal(k_state, (B, STATE_DIM), jnp.float32)
    action = jax.random.randint(k_action, (B, 1), 0, ACTION_DIM, jnp.int32)
    out = jax.block_until_ready(fnet_forward(state, action, w1, b1, w2, b2))
    ref = _reference(state, action, w1, b1, w2, b2)
    assert out.shape == (B, OUT_DIM)
    # Tolerance relaxed vs the pure-f32 reference because matmul operands are
    # bf16 (accumulation is f32).
    assert jnp.allclose(out, ref, atol=3e-2, rtol=3e-2), "mismatch vs reference"

    # Ragged-grid check (B not a multiple of the batch tile -> masked last block).
    B2 = 5
    state2 = state[:B2]
    action2 = action[:B2]
    out2 = jax.block_until_ready(fnet_forward(state2, action2, w1, b1, w2, b2))
    ref2 = _reference(state2, action2, w1, b1, w2, b2)
    assert out2.shape == (B2, OUT_DIM)
    assert jnp.allclose(out2, ref2, atol=3e-2, rtol=3e-2), "ragged mismatch"

    print("KERNEL_OK")
</pallas_src>

<mosaic_0001>
module attributes {stable_mosaic.version = 11 : i64} {
  func.func @_fnet_kernel(%arg0: i32, %arg1: memref<8x288xf32, #tpu.memory_space<vmem>>, %arg2: memref<8x1xi32, #tpu.memory_space<vmem>>, %arg3: memref<16x256xf32, #tpu.memory_space<vmem>>, %arg4: memref<288x256xbf16, #tpu.memory_space<vmem>>, %arg5: memref<256x288xbf16, #tpu.memory_space<vmem>>, %arg6: memref<1x288xf32, #tpu.memory_space<vmem>>, %arg7: memref<8x288xf32, #tpu.memory_space<vmem>>) attributes {dimension_semantics = [#tpu.dimension_semantics<parallel>], iteration_bounds = array<i64: 1>, scalar_prefetch = 0 : i64, scratch_operands = 0 : i64, tpu.core_type = #tpu.core_type<tc>, window_params = [{transform_indices = @transform_0, window_bounds = array<i64: 8, 288>}, {transform_indices = @transform_1, window_bounds = array<i64: 8, 1>}, {pipeline_mode = #tpu.pipeline_mode<synchronous>, transform_indices = @transform_2, window_bounds = array<i64: 16, 256>}, {pipeline_mode = #tpu.pipeline_mode<synchronous>, transform_indices = @transform_3, window_bounds = array<i64: 288, 256>}, {pipeline_mode = #tpu.pipeline_mode<synchronous>, transform_indices = @transform_4, window_bounds = array<i64: 256, 288>}, {pipeline_mode = #tpu.pipeline_mode<synchronous>, transform_indices = @transform_5, window_bounds = array<i64: 1, 288>}, {transform_indices = @transform_6, window_bounds = array<i64: 8, 288>}]} {
    %c0 = arith.constant 0 : index
    %c0_0 = arith.constant 0 : index
    %0 = vector.load %arg1[%c0, %c0_0] : memref<8x288xf32, #tpu.memory_space<vmem>>, vector<8x288xf32>
    %1 = arith.truncf %0 : vector<8x288xf32> to vector<8x288xbf16>
    %c0_1 = arith.constant 0 : index
    %c0_2 = arith.constant 0 : index
    %2 = vector.load %arg4[%c0_1, %c0_2] : memref<288x256xbf16, #tpu.memory_space<vmem>>, vector<288x256xbf16>
    %cst = arith.constant dense<0.000000e+00> : vector<8x256xf32>
    %3 = tpu.matmul %1, %2, %cst {dimension_numbers = #tpu.dot_dimension_numbers<[1], [0], [0], [1], [0, 0, 1, 1], [], []>} : vector<8x288xbf16>, vector<288x256xbf16>, vector<8x256xf32> -> vector<8x256xf32>
    %4 = tpu.iota {dimensions = array<i32: 1>} : vector<8x16xi32>
    %c0_3 = arith.constant 0 : index
    %c0_4 = arith.constant 0 : index
    %5 = vector.load %arg2[%c0_3, %c0_4] : memref<8x1xi32, #tpu.memory_space<vmem>>, vector<8x1xi32>
    %6 = vector.broadcast %5 : vector<8x1xi32> to vector<8x16xi32>
    %7 = arith.cmpi eq, %4, %6 : vector<8x16xi32>
    %8 = arith.extui %7 : vector<8x16xi1> to vector<8x16xi32>
    %9 = arith.sitofp %8 : vector<8x16xi32> to vector<8x16xf32>
    %c0_5 = arith.constant 0 : index
    %c0_6 = arith.constant 0 : index
    %10 = vector.load %arg3[%c0_5, %c0_6] : memref<16x256xf32, #tpu.memory_space<vmem>>, vector<16x256xf32>
    %cst_7 = arith.constant dense<0.000000e+00> : vector<8x256xf32>
    %11 = tpu.matmul %9, %10, %cst_7 {dimension_numbers = #tpu.dot_dimension_numbers<[1], [0], [0], [1], [0, 0, 1, 1], [], []>} : vector<8x16xf32>, vector<16x256xf32>, vector<8x256xf32> -> vector<8x256xf32>
    %12 = arith.addf %3, %11 : vector<8x256xf32>
    %cst_8 = arith.constant 0.000000e+00 : f32
    %13 = vector.broadcast %cst_8 : f32 to vector<8x256xf32>
    %14 = arith.maximumf %12, %13 : vector<8x256xf32>
    %15 = arith.truncf %14 : vector<8x256xf32> to vector<8x256xbf16>
    %c0_9 = arith.constant 0 : index
    %c0_10 = arith.constant 0 : index
    %16 = vector.load %arg5[%c0_9, %c0_10] : memref<256x288xbf16, #tpu.memory_space<vmem>>, vector<256x288xbf16>
    %cst_11 = arith.constant dense<0.000000e+00> : vector<8x288xf32>
    %17 = tpu.matmul %15, %16, %cst_11 {dimension_numbers = #tpu.dot_dimension_numbers<[1], [0], [0], [1], [0, 0, 1, 1], [], []>} : vector<8x256xbf16>, vector<256x288xbf16>, vector<8x288xf32> -> vector<8x288xf32>
    %c0_12 = arith.constant 0 : index
    %c0_13 = arith.constant 0 : index
    %18 = vector.load %arg6[%c0_12, %c0_13] : memref<1x288xf32, #tpu.memory_space<vmem>>, vector<1x288xf32>
    %19 = vector.broadcast %18 : vector<1x288xf32> to vector<8x288xf32>
    %20 = arith.addf %17, %19 : vector<8x288xf32>
    %c0_14 = arith.constant 0 : index
    %c0_15 = arith.constant 0 : index
    %21 = vector.load %arg7[%c0_14, %c0_15] : memref<8x288xf32, #tpu.memory_space<vmem>>, vector<8x288xf32>
    tpu.vector_store %arg7[%c0_14, %c0_15], %20 {strides = array<i32>} : memref<8x288xf32, #tpu.memory_space<vmem>>, vector<8x288xf32>,
    return
  }
  func.func @transform_0(%arg0: i32) -> (i32, i32) {
    %c0_i32 = arith.constant 0 : i32
    %c0_i32_0 = arith.constant 0 : i32
    return %arg0, %c0_i32 : i32, i32
  }
  func.func @transform_1(%arg0: i32) -> (i32, i32) {
    %c0_i32 = arith.constant 0 : i32
    %c0_i32_0 = arith.constant 0 : i32
    return %arg0, %c0_i32 : i32, i32
  }
  func.func @transform_2(%arg0: i32) -> (i32, i32) {
    %c0_i32 = arith.constant 0 : i32
    %c0_i32_0 = arith.constant 0 : i32
    %c0_i32_1 = arith.constant 0 : i32
    return %c0_i32, %c0_i32_0 : i32, i32
  }
  func.func @transform_3(%arg0: i32) -> (i32, i32) {
    %c0_i32 = arith.constant 0 : i32
    %c0_i32_0 = arith.constant 0 : i32
    %c0_i32_1 = arith.constant 0 : i32
    return %c0_i32, %c0_i32_0 : i32, i32
  }
  func.func @transform_4(%arg0: i32) -> (i32, i32) {
    %c0_i32 = arith.constant 0 : i32
    %c0_i32_0 = arith.constant 0 : i32
    %c0_i32_1 = arith.constant 0 : i32
    return %c0_i32, %c0_i32_0 : i32, i32
  }
  func.func @transform_5(%arg0: i32) -> (i32, i32) {
    %c0_i32 = arith.constant 0 : i32
    %c0_i32_0 = arith.constant 0 : i32
    %c0_i32_1 = arith.constant 0 : i32
    return %c0_i32, %c0_i32_0 : i32, i32
  }
  func.func @transform_6(%arg0: i32) -> (i32, i32) {
    %c0_i32 = arith.constant 0 : i32
    %c0_i32_0 = arith.constant 0 : i32
    return %arg0, %c0_i32 : i32, i32
  }
}

</mosaic_0001>

<llo_original>
// kernel: tpu_custom_call.1
$region0: #{tpu_custom_call.1}
  #allocation0 [shape = 'u32[]', space=smem, size = 0x4, offset = 0x4, fixed_abs, tag = 'smem constant byte address 0x4 - core index']
  #allocation1 [shape = 'u32[144,128]{1,0:T(1,128)}', space=vmem, size = 0x12000, scoped, tag = 'internal scratch']
  %s0 = inlined_call_operand.vmem [shape: f32[8,288], index: 0, kind: input, shape index: {}]
  %s1 = inlined_call_operand.vmem [shape: s32[8,1], index: 1, kind: input, shape index: {}]
  %s2 = inlined_call_operand.vmem [shape: f32[16,256], index: 2, kind: input, shape index: {}]
  %s3 = inlined_call_operand.vmem [shape: bf16[288,256], index: 3, kind: input, shape index: {}]
  %s4 = inlined_call_operand.vmem [shape: bf16[256,288], index: 4, kind: input, shape index: {}]
  %s5 = inlined_call_operand.vmem [shape: f32[1,288], index: 5, kind: input, shape index: {}]
  %s6 = inlined_call_operand.hbm [shape: f32[8,288], index: 6, kind: output, shape index: {}]
  %s7 = sld [smem:[#allocation0]]
  $region34: #{tpu_custom_call.1} parent=0
    _
  %s9 = ssub.s32 1, %s7
  %s10 = scalar_select 0, %s9, %s7
  $region1: #{tpu_custom_call.1} parent=0
    #allocation2 [shape = 'u8[12288]{0}', space=vmem, size = 0x3000, scoped, tag = 'output window, operand 0, single buffered']
    #allocation3 [shape = 's32[1]{0}', space=sflag, size = 0x4, scoped, tag = 'scoped memory for tpu_custom_call.1']
    %11 = vsyncpa [#allocation3], 0
    // Predicated region
    $region2: #{tpu_custom_call.1} parent=1 // pred_check
      _
    $region3: #{tpu_custom_call.1} parent=1 // pred_check_branch
      %13 = sbr.rel (0) target = $region5
    $region4: #{tpu_custom_call.1} parent=1 // pred_region
      _
    $region5: #{tpu_custom_call.1} parent=1 // pred_fallthru
      _
    // Predicated region
    $region6: #{tpu_custom_call.1} parent=1 // pred_check
      _
    $region7: #{tpu_custom_call.1} parent=1 // pred_check_branch
      %15 = sbr.rel (0) target = $region9
    $region8: #{tpu_custom_call.1} parent=1 // pred_region
      _
    $region9: #{tpu_custom_call.1} parent=1 // pred_fallthru
      _
    // Predicated region
    $region10: #{tpu_custom_call.1} parent=1 // pred_check
      _
    $region11: #{tpu_custom_call.1} parent=1 // pred_check_branch
      %17 = sbr.rel (0) target = $region13
    $region12: #{tpu_custom_call.1} parent=1 // pred_region
      _
    $region13: #{tpu_custom_call.1} parent=1 // pred_fallthru
      _
    // Predicated region
    $region14: #{tpu_custom_call.1} parent=1 // pred_check
      _
    $region15: #{tpu_custom_call.1} parent=1 // pred_check_branch
      %19 = sbr.rel (0) target = $region17
    $region16: #{tpu_custom_call.1} parent=1 // pred_region
      _
    $region17: #{tpu_custom_call.1} parent=1 // pred_fallthru
      _
    // Predicated region
    $region18: #{tpu_custom_call.1} parent=1 // pred_check
      _
    $region19: #{tpu_custom_call.1} parent=1 // pred_check_branch
      %21 = sbr.rel (0) target = $region21
    $region20: #{tpu_custom_call.1} parent=1 // pred_region
      _
    $region21: #{tpu_custom_call.1} parent=1 // pred_fallthru
      _
    // Predicated region
    $region22: #{tpu_custom_call.1} parent=1 // pred_check
      _
    $region23: #{tpu_custom_call.1} parent=1 // pred_check_branch
      %23 = sbr.rel (0) target = $region25
    $region24: #{tpu_custom_call.1} parent=1 // pred_region
      _
    $region25: #{tpu_custom_call.1} parent=1 // pred_fallthru
      _
    %v25 = vld [vmem:[%s0] sm:$0xff]
    %v26 = vld [vmem:[%s0 + $0x8] sm:$0xff]
    %v27 = vld [vmem:[%s0 + $0x10] sm:$0xff]
    %v28 = vpack.c.bf16 %v25, %v25
    %v29 = vpack.c.bf16 %v26, %v26
    %v30 = vpack.c.bf16 %v27, %v27
    %v31 = vld [vmem:[%s3] sm:$0xff]
    %v32 = vld [vmem:[%s3 + $0x8] sm:$0xff]
    %v33 = vld [vmem:[%s3 + $0x10] sm:$0xff]
    %v34 = vld [vmem:[%s3 + $0x18] sm:$0xff]
    %v35 = vld [vmem:[%s3 + $0x20] sm:$0xff]
    %v36 = vld [vmem:[%s3 + $0x28] sm:$0xff]
    %v37 = vld [vmem:[%s3 + $0x30] sm:$0xff]
    %v38 = vld [vmem:[%s3 + $0x38] sm:$0xff]
    %v39 = vld [vmem:[%s3 + $0x40] sm:$0xff]
    %v40 = vld [vmem:[%s3 + $0x48] sm:$0xff]
    %v41 = vld [vmem:[%s3 + $0x50] sm:$0xff]
    %v42 = vld [vmem:[%s3 + $0x58] sm:$0xff]
    %v43 = vld [vmem:[%s3 + $0x60] sm:$0xff]
    %v44 = vld [vmem:[%s3 + $0x68] sm:$0xff]
    %v45 = vld [vmem:[%s3 + $0x70] sm:$0xff]
    %v46 = vld [vmem:[%s3 + $0x78] sm:$0xff]
    %v47 = vld [vmem:[%s3 + $0x80] sm:$0xff]
    %v48 = vld [vmem:[%s3 + $0x88] sm:$0xff]
    %v49 = vld [vmem:[%s3 + $0x90] sm:$0xff]
    %v50 = vld [vmem:[%s3 + $0x98] sm:$0xff]
    %v51 = vld [vmem:[%s3 + $0xa0] sm:$0xff]
    %v52 = vld [vmem:[%s3 + $0xa8] sm:$0xff]
    %v53 = vld [vmem:[%s3 + $0xb0] sm:$0xff]
    %v54 = vld [vmem:[%s3 + $0xb8] sm:$0xff]
    %v55 = vld [vmem:[%s3 + $0xc0] sm:$0xff]
    %v56 = vld [vmem:[%s3 + $0xc8] sm:$0xff]
    %v57 = vld [vmem:[%s3 + $0xd0] sm:$0xff]
    %v58 = vld [vmem:[%s3 + $0xd8] sm:$0xff]
    %v59 = vld [vmem:[%s3 + $0xe0] sm:$0xff]
    %v60 = vld [vmem:[%s3 + $0xe8] sm:$0xff]
    %v61 = vld [vmem:[%s3 + $0xf0] sm:$0xff]
    %v62 = vld [vmem:[%s3 + $0xf8] sm:$0xff]
    %v63 = vld [vmem:[%s3 + $0x100] sm:$0xff]
    %v64 = vld [vmem:[%s3 + $0x108] sm:$0xff]
    %v65 = vld [vmem:[%s3 + $0x110] sm:$0xff]
    %v66 = vld [vmem:[%s3 + $0x118] sm:$0xff]
    %v67 = vlaneseq
    %v68 = vand.u32 %v67, 127
    %v69 = vld [vmem:[%s1] sm:$0xff]
    %70 = vset.pattern.permute.xlu0 0
    %71 = vperm.xlu0 %70, %v69
    %v72 = vpop.permute.xlu0 %71
    %vm73 = vcmp.eq.s32.totalorder %v68, %v72
    %v74 = vsel %vm73, 1, 0
    %v75 = vcvt.s32.f32 %v74
    %v76 = vld [vmem:[%s2] sm:$0xff]
    %v77 = vld [vmem:[%s2 + $0x8] sm:$0xff]
    %v78 = vld [vmem:[%s2 + $0x10] sm:$0xff]
    %v79 = vld [vmem:[%s2 + $0x18] sm:$0xff]
    %vm80 = vcmask 130048
    %v82 = vsel %vm80, %v75, 0
    %84 = vmatprep.subr.mxu0 %v77
    %85 = vmatpush1.msra.mxu0 %v76
    %86 = vmatprep.subr.mxu0 %v79
    %87 = vmatpush1.msra.mxu0 %v78
    %88 = vmatprep.subr.mxu0 0.0
    %89 = vmatpush1.msra.mxu0 0.0
    %90 = vmatprep.subr.mxu0 0.0
    %91 = vmatpush1.msra.mxu0 0.0
    %92 = vmatprep.subr.mxu0 0.0
    %93 = vmatpush1.msra.mxu0 0.0
    %94 = vmatprep.subr.mxu0 0.0
    %95 = vmatpush1.msra.mxu0 0.0
    %96 = vmatprep.subr.mxu0 0.0
    %97 = vmatpush1.msra.mxu0 0.0
    %98 = vmatprep.subr.mxu0 0.0
    %99 = vmatpush1.msra.mxu0 0.0
    %100 = vmatprep.subr.mxu0 0.0
    %101 = vmatpush1.msra.mxu0 0.0
    %102 = vmatprep.subr.mxu0 0.0
    %103 = vmatpush1.msra.mxu0 0.0
    %104 = vmatprep.subr.mxu0 0.0
    %105 = vmatpush1.msra.mxu0 0.0
    %106 = vmatprep.subr.mxu0 0.0
    %107 = vmatpush1.msra.mxu0 0.0
    %108 = vmatprep.subr.mxu0 0.0
    %109 = vmatpush1.msra.mxu0 0.0
    %110 = vmatprep.subr.mxu0 0.0
    %111 = vmatpush1.msra.mxu0 0.0
    %112 = vmatprep.subr.mxu0 0.0
    %113 = vmatpush1.msra.mxu0 0.0
    %114 = vmatprep.subr.mxu0 0.0
    %115 = vmatpush1.msra.mxu0 0.0
    %116 = vmatprep.subr.mxu0 0.0
    %117 = vmatpush1.msra.mxu0 0.0
    %118 = vmatprep.subr.mxu0 0.0
    %119 = vmatpush1.msra.mxu0 0.0
    %120 = vmatprep.subr.mxu0 0.0
    %121 = vmatpush1.msra.mxu0 0.0
    %122 = vmatprep.subr.mxu0 0.0
    %123 = vmatpush1.msra.mxu0 0.0
    %124 = vmatprep.subr.mxu0 0.0
    %125 = vmatpush1.msra.mxu0 0.0
    %126 = vmatprep.subr.mxu0 0.0
    %127 = vmatpush1.msra.mxu0 0.0
    %128 = vmatprep.subr.mxu0 0.0
    %129 = vmatpush1.msra.mxu0 0.0
    %130 = vmatprep.subr.mxu0 0.0
    %131 = vmatpush1.msra.mxu0 0.0
    %132 = vmatprep.subr.mxu0 0.0
    %133 = vmatpush1.msra.mxu0 0.0
    %134 = vmatprep.subr.mxu0 0.0
    %135 = vmatpush1.msra.mxu0 0.0
    %136 = vmatprep.subr.mxu0 0.0
    %137 = vmatpush1.msra.mxu0 0.0
    %138 = vmatprep.subr.mxu0 0.0
    %139 = vmatpush1.msra.mxu0 0.0
    %140 = vmatprep.subr.mxu0 0.0
    %141 = vmatpush1.msra.mxu0 0.0
    %142 = vmatprep.subr.mxu0 0.0
    %143 = vmatpush1.msra.mxu0 0.0
    %144 = vmatprep.subr.mxu0 0.0
    %145 = vmatpush1.msra.mxu0 0.0
    %146 = vmatprep.subr.mxu0 0.0
    %147 = vmatpush1.msra.mxu0 0.0
    %148 = vmatprep.mubr.f32.mxu0 0.0
    %149 = vmatmul.mubr.f32.gmra.mrb[0].mxu0 %v82
    %v150 = vpop.f32.mrb[0].mxu0
    %v151 = vadd.f32 0.0, %v150
    %v152 = vpop.f32.mrb[0].mxu0
    %v153 = vadd.f32 0.0, %v152
    %154 = vdwg.mxu0
    %v191 = vunpack.c.l.b16 %v31
    %v192 = vunpack.c.h.b16 %v31
    %v193 = vunpack.c.l.b16 %v32
    %v194 = vunpack.c.h.b16 %v32
    %v195 = vunpack.c.l.b16 %v33
    %v196 = vunpack.c.h.b16 %v33
    %v197 = vunpack.c.l.b16 %v34
    %v198 = vunpack.c.h.b16 %v34
    %v199 = vunpack.c.l.b16 %v35
    %v200 = vunpack.c.h.b16 %v35
    %v201 = vunpack.c.l.b16 %v36
    %v202 = vunpack.c.h.b16 %v36
    %v203 = vunpack.c.l.b16 %v37
    %v204 = vunpack.c.h.b16 %v37
    %v205 = vunpack.c.l.b16 %v38
    %v206 = vunpack.c.h.b16 %v38
    %v207 = vunpack.c.l.b16 %v39
    %v208 = vunpack.c.h.b16 %v39
    %v209 = vunpack.c.l.b16 %v40
    %v210 = vunpack.c.h.b16 %v40
    %v211 = vunpack.c.l.b16 %v41
    %v212 = vunpack.c.h.b16 %v41
    %v213 = vunpack.c.l.b16 %v42
    %v214 = vunpack.c.h.b16 %v42
    %v215 = vunpack.c.l.b16 %v43
    %v216 = vunpack.c.h.b16 %v43
    %v217 = vunpack.c.l.b16 %v44
    %v218 = vunpack.c.h.b16 %v44
    %v219 = vunpack.c.l.b16 %v45
    %v220 = vunpack.c.h.b16 %v45
    %v221 = vunpack.c.l.b16 %v46
    %v222 = vunpack.c.h.b16 %v46
    %v223 = vunpack.c.l.b16 %v47
    %v224 = vunpack.c.h.b16 %v47
    %v225 = vunpack.c.l.b16 %v48
    %v226 = vunpack.c.h.b16 %v48
    %v227 = vunpack.c.l.b16 %v49
    %v228 = vunpack.c.h.b16 %v49
    %v229 = vunpack.c.l.b16 %v50
    %v230 = vunpack.c.h.b16 %v50
    %v231 = vunpack.c.l.b16 %v51
    %v232 = vunpack.c.h.b16 %v51
    %v233 = vunpack.c.l.b16 %v52
    %v234 = vunpack.c.h.b16 %v52
    %v235 = vunpack.c.l.b16 %v53
    %v236 = vunpack.c.h.b16 %v53
    %v237 = vunpack.c.l.b16 %v54
    %v238 = vunpack.c.h.b16 %v54
    %v239 = vunpack.c.l.b16 %v55
    %v240 = vunpack.c.h.b16 %v55
    %v241 = vunpack.c.l.b16 %v56
    %v242 = vunpack.c.h.b16 %v56
    %v243 = vunpack.c.l.b16 %v57
    %v244 = vunpack.c.h.b16 %v57
    %v245 = vunpack.c.l.b16 %v58
    %v246 = vunpack.c.h.b16 %v58
    %v247 = vunpack.c.l.b16 %v59
    %v248 = vunpack.c.h.b16 %v59
    %v249 = vunpack.c.l.b16 %v60
    %v250 = vunpack.c.h.b16 %v60
    %v251 = vunpack.c.l.b16 %v61
    %v252 = vunpack.c.h.b16 %v61
    %v253 = vunpack.c.l.b16 %v62
    %v254 = vunpack.c.h.b16 %v62
    %v255 = vunpack.c.l.b16 %v63
    %v256 = vunpack.c.h.b16 %v63
    %v257 = vunpack.c.l.b16 %v64
    %v258 = vunpack.c.h.b16 %v64
    %v259 = vunpack.c.l.b16 %v65
    %v260 = vunpack.c.h.b16 %v65
    %v261 = vunpack.c.l.b16 %v66
    %v262 = vunpack.c.h.b16 %v66
    %v263 = vpack.c.b16 %v193, %v191
    %v264 = vpack.c.b16 %v194, %v192
    %v265 = vpack.c.b16 %v197, %v195
    %v266 = vpack.c.b16 %v198, %v196
    %v267 = vpack.c.b16 %v201, %v199
    %v268 = vpack.c.b16 %v202, %v200
    %v269 = vpack.c.b16 %v205, %v203
    %v270 = vpack.c.b16 %v206, %v204
    %v271 = vpack.c.b16 %v209, %v207
    %v272 = vpack.c.b16 %v210, %v208
    %v273 = vpack.c.b16 %v213, %v211
    %v274 = vpack.c.b16 %v214, %v212
    %v275 = vpack.c.b16 %v217, %v215
    %v276 = vpack.c.b16 %v218, %v216
    %v277 = vpack.c.b16 %v221, %v219
    %v278 = vpack.c.b16 %v222, %v220
    %v279 = vpack.c.b16 %v225, %v223
    %v280 = vpack.c.b16 %v226, %v224
    %v281 = vpack.c.b16 %v229, %v227
    %v282 = vpack.c.b16 %v230, %v228
    %v283 = vpack.c.b16 %v233, %v231
    %v284 = vpack.c.b16 %v234, %v232
    %v285 = vpack.c.b16 %v237, %v235
    %v286 = vpack.c.b16 %v238, %v236
    %v287 = vpack.c.b16 %v241, %v239
    %v288 = vpack.c.b16 %v242, %v240
    %v289 = vpack.c.b16 %v245, %v243
    %v290 = vpack.c.b16 %v246, %v244
    %v291 = vpack.c.b16 %v249, %v247
    %v292 = vpack.c.b16 %v250, %v248
    %v293 = vpack.c.b16 %v253, %v251
    %v294 = vpack.c.b16 %v254, %v252
    %v295 = vpack.c.b16 %v257, %v255
    %v296 = vpack.c.b16 %v258, %v256
    %v297 = vpack.c.b16 %v261, %v259
    %v298 = vpack.c.b16 %v262, %v260
    %vm335 = vcmask 261120
    %v337 = vsel %vm335, %v30, 0
    %339 = vmatprep.subr.bf16.mxu0 %v264
    %340 = vmatpush1.bf16.msra.mxu0 %v263
    %341 = vmatprep.subr.bf16.mxu0 %v266
    %342 = vmatpush1.bf16.msra.mxu0 %v265
    %343 = vmatprep.subr.bf16.mxu0 %v268
    %344 = vmatpush1.bf16.msra.mxu0 %v267
    %345 = vmatprep.subr.bf16.mxu0 %v270
    %346 = vmatpush1.bf16.msra.mxu0 %v269
    %347 = vmatprep.subr.bf16.mxu0 %v272
    %348 = vmatpush1.bf16.msra.mxu0 %v271
    %349 = vmatprep.subr.bf16.mxu0 %v274
    %350 = vmatpush1.bf16.msra.mxu0 %v273
    %351 = vmatprep.subr.bf16.mxu0 %v276
    %352 = vmatpush1.bf16.msra.mxu0 %v275
    %353 = vmatprep.subr.bf16.mxu0 %v278
    %354 = vmatpush1.bf16.msra.mxu0 %v277
    %355 = vmatprep.subr.bf16.mxu0 %v280
    %356 = vmatpush1.bf16.msra.mxu0 %v279
    %357 = vmatprep.subr.bf16.mxu0 %v282
    %358 = vmatpush1.bf16.msra.mxu0 %v281
    %359 = vmatprep.subr.bf16.mxu0 %v284
    %360 = vmatpush1.bf16.msra.mxu0 %v283
    %361 = vmatprep.subr.bf16.mxu0 %v286
    %362 = vmatpush1.bf16.msra.mxu0 %v285
    %363 = vmatprep.subr.bf16.mxu0 %v288
    %364 = vmatpush1.bf16.msra.mxu0 %v287
    %365 = vmatprep.subr.bf16.mxu0 %v290
    %366 = vmatpush1.bf16.msra.mxu0 %v289
    %367 = vmatprep.subr.bf16.mxu0 %v292
    %368 = vmatpush1.bf16.msra.mxu0 %v291
    %369 = vmatprep.subr.bf16.mxu0 %v294
    %370 = vmatpush1.bf16.msra.mxu0 %v293
    %371 = vmatprep.mubr.bf16.mxu0 %v29
    %372 = vmatmul.mubr.bf16.gmra.mrb[0].mxu0 %v28
    %v373 = vpop.f32.mrb[0].mxu0
    %v374 = vadd.f32 %v151, %v373
    %v375 = vpop.f32.mrb[0].mxu0
    %v376 = vadd.f32 %v153, %v375
    %v377 = vpop.f32.mrb[0].mxu0
    %v378 = vpop.f32.mrb[0].mxu0
    %379 = vdwg.mxu0
    %380 = vmatprep.subr.bf16.mxu0 %v296
    %381 = vmatpush1.bf16.msra.mxu0 %v295
    %382 = vmatprep.subr.bf16.mxu0 %v298
    %383 = vmatpush1.bf16.msra.mxu0 %v297
    %384 = vmatprep.subr.bf16.mxu0 0
    %385 = vmatpush1.bf16.msra.mxu0 0
    %386 = vmatprep.subr.bf16.mxu0 0
    %387 = vmatpush1.bf16.msra.mxu0 0
    %388 = vmatprep.subr.bf16.mxu0 0
    %389 = vmatpush1.bf16.msra.mxu0 0
    %390 = vmatprep.subr.bf16.mxu0 0
    %391 = vmatpush1.bf16.msra.mxu0 0
    %392 = vmatprep.subr.bf16.mxu0 0
    %393 = vmatpush1.bf16.msra.mxu0 0
    %394 = vmatprep.subr.bf16.mxu0 0
    %395 = vmatpush1.bf16.msra.mxu0 0
    %396 = vmatprep.subr.bf16.mxu0 0
    %397 = vmatpush1.bf16.msra.mxu0 0
    %398 = vmatprep.subr.bf16.mxu0 0
    %399 = vmatpush1.bf16.msra.mxu0 0
    %400 = vmatprep.subr.bf16.mxu0 0
    %401 = vmatpush1.bf16.msra.mxu0 0
    %402 = vmatprep.subr.bf16.mxu0 0
    %403 = vmatpush1.bf16.msra.mxu0 0
    %404 = vmatprep.subr.bf16.mxu0 0
    %405 = vmatpush1.bf16.msra.mxu0 0
    %406 = vmatprep.subr.bf16.mxu0 0
    %407 = vmatpush1.bf16.msra.mxu0 0
    %408 = vmatprep.subr.bf16.mxu0 0
    %409 = vmatpush1.bf16.msra.mxu0 0
    %410 = vmatprep.subr.bf16.mxu0 0
    %411 = vmatpush1.bf16.msra.mxu0 0
    %412 = vmatprep.mubr.bf16.mxu0 0
    %413 = vmatmul.mubr.bf16.gmra.mrb[0].mxu0 %v337
    %v414 = vpop.f32.mrb[0].mxu0
    %v415 = vadd.f32 %v374, %v414
    %v416 = vpop.f32.mrb[0].mxu0
    %v417 = vadd.f32 %v376, %v416
    %v418 = vpop.f32.mrb[0].mxu0
    %v419 = vpop.f32.mrb[0].mxu0
    %420 = vdwg.mxu0
    %v421 = vmax.f32 %v415, 0.0
    %v422 = vmax.f32 %v417, 0.0
    %v423 = vpack.c.bf16 %v421, %v421
    %v424 = vpack.c.bf16 %v422, %v422
    %v425 = vld [vmem:[%s4] sm:$0xff]
    %v426 = vld [vmem:[%s4 + $0x8] sm:$0xf]
    %v427 = vld [vmem:[%s4 + $0xc] sm:$0xff]
    %v428 = vld [vmem:[%s4 + $0x14] sm:$0xf]
    %v429 = vld [vmem:[%s4 + $0x18] sm:$0xff]
    %v430 = vld [vmem:[%s4 + $0x20] sm:$0xf]
    %v431 = vld [vmem:[%s4 + $0x24] sm:$0xff]
    %v432 = vld [vmem:[%s4 + $0x2c] sm:$0xf]
    %v433 = vld [vmem:[%s4 + $0x30] sm:$0xff]
    %v434 = vld [vmem:[%s4 + $0x38] sm:$0xf]
    %v435 = vld [vmem:[%s4 + $0x3c] sm:$0xff]
    %v436 = vld [vmem:[%s4 + $0x44] sm:$0xf]
    %v437 = vld [vmem:[%s4 + $0x48] sm:$0xff]
    %v438 = vld [vmem:[%s4 + $0x50] sm:$0xf]
    %v439 = vld [vmem:[%s4 + $0x54] sm:$0xff]
    %v440 = vld [vmem:[%s4 + $0x5c] sm:$0xf]
    %v441 = vld [vmem:[%s4 + $0x60] sm:$0xff]
    %v442 = vld [vmem:[%s4 + $0x68] sm:$0xf]
    %v443 = vld [vmem:[%s4 + $0x6c] sm:$0xff]
    %v444 = vld [vmem:[%s4 + $0x74] sm:$0xf]
    %v445 = vld [vmem:[%s4 + $0x78] sm:$0xff]
    %v446 = vld [vmem:[%s4 + $0x80] sm:$0xf]
    %v447 = vld [vmem:[%s4 + $0x84] sm:$0xff]
    %v448 = vld [vmem:[%s4 + $0x8c] sm:$0xf]
    %v449 = vld [vmem:[%s4 + $0x90] sm:$0xff]
    %v450 = vld [vmem:[%s4 + $0x98] sm:$0xf]
    %v451 = vld [vmem:[%s4 + $0x9c] sm:$0xff]
    %v452 = vld [vmem:[%s4 + $0xa4] sm:$0xf]
    %v453 = vld [vmem:[%s4 + $0xa8] sm:$0xff]
    %v454 = vld [vmem:[%s4 + $0xb0] sm:$0xf]
    %v455 = vld [vmem:[%s4 + $0xb4] sm:$0xff]
    %v456 = vld [vmem:[%s4 + $0xbc] sm:$0xf]
    %v457 = vld [vmem:[%s4 + $0xc0] sm:$0xff]
    %v458 = vld [vmem:[%s4 + $0xc8] sm:$0xf]
    %v459 = vld [vmem:[%s4 + $0xcc] sm:$0xff]
    %v460 = vld [vmem:[%s4 + $0xd4] sm:$0xf]
    %v461 = vld [vmem:[%s4 + $0xd8] sm:$0xff]
    %v462 = vld [vmem:[%s4 + $0xe0] sm:$0xf]
    %v463 = vld [vmem:[%s4 + $0xe4] sm:$0xff]
    %v464 = vld [vmem:[%s4 + $0xec] sm:$0xf]
    %v465 = vld [vmem:[%s4 + $0xf0] sm:$0xff]
    %v466 = vld [vmem:[%s4 + $0xf8] sm:$0xf]
    %v467 = vld [vmem:[%s4 + $0xfc] sm:$0xff]
    %v468 = vld [vmem:[%s4 + $0x104] sm:$0xf]
    %v469 = vld [vmem:[%s4 + $0x108] sm:$0xff]
    %v470 = vld [vmem:[%s4 + $0x110] sm:$0xf]
    %v471 = vld [vmem:[%s4 + $0x114] sm:$0xff]
    %v472 = vld [vmem:[%s4 + $0x11c] sm:$0xf]
    %v473 = vld [vmem:[%s4 + $0x120] sm:$0xff]
    %v474 = vld [vmem:[%s4 + $0x128] sm:$0xf]
    %v475 = vld [vmem:[%s4 + $0x12c] sm:$0xff]
    %v476 = vld [vmem:[%s4 + $0x134] sm:$0xf]
    %v477 = vld [vmem:[%s4 + $0x138] sm:$0xff]
    %v478 = vld [vmem:[%s4 + $0x140] sm:$0xf]
    %v479 = vld [vmem:[%s4 + $0x144] sm:$0xff]
    %v480 = vld [vmem:[%s4 + $0x14c] sm:$0xf]
    %v481 = vld [vmem:[%s4 + $0x150] sm:$0xff]
    %v482 = vld [vmem:[%s4 + $0x158] sm:$0xf]
    %v483 = vld [vmem:[%s4 + $0x15c] sm:$0xff]
    %v484 = vld [vmem:[%s4 + $0x164] sm:$0xf]
    %v485 = vld [vmem:[%s4 + $0x168] sm:$0xff]
    %v486 = vld [vmem:[%s4 + $0x170] sm:$0xf]
    %v487 = vld [vmem:[%s4 + $0x174] sm:$0xff]
    %v488 = vld [vmem:[%s4 + $0x17c] sm:$0xf]
    %v489 = vld [vmem:[%s5] sm:$0x7]
    %v491 = vlaneseq
    %v492 = vshrl.u32 %v491, 7
    %v493 = vsub.s32 0, %v492
    %v494 = vrot.slane %v489, %v493
    %v495 = vlaneseq
    %v496 = vshrl.u32 %v495, 7
    %v497 = vsub.s32 1, %v496
    %v498 = vrot.slane %v489, %v497
    %v499 = vlaneseq
    %v500 = vshrl.u32 %v499, 7
    %v501 = vsub.s32 2, %v500
    %v502 = vrot.slane %v489, %v501
    %v570 = vunpack.c.l.b16 %v425
    %v571 = vunpack.c.h.b16 %v425
    %v572 = vunpack.c.l.b16 %v426
    %v573 = vunpack.c.l.b16 %v427
    %v574 = vunpack.c.h.b16 %v427
    %v575 = vunpack.c.l.b16 %v428
    %v576 = vunpack.c.l.b16 %v429
    %v577 = vunpack.c.h.b16 %v429
    %v578 = vunpack.c.l.b16 %v430
    %v579 = vunpack.c.l.b16 %v431
    %v580 = vunpack.c.h.b16 %v431
    %v581 = vunpack.c.l.b16 %v432
    %v582 = vunpack.c.l.b16 %v433
    %v583 = vunpack.c.h.b16 %v433
    %v584 = vunpack.c.l.b16 %v434
    %v585 = vunpack.c.l.b16 %v435
    %v586 = vunpack.c.h.b16 %v435
    %v587 = vunpack.c.l.b16 %v436
    %v588 = vunpack.c.l.b16 %v437
    %v589 = vunpack.c.h.b16 %v437
    %v590 = vunpack.c.l.b16 %v438
    %v591 = vunpack.c.l.b16 %v439
    %v592 = vunpack.c.h.b16 %v439
    %v593 = vunpack.c.l.b16 %v440
    %v594 = vunpack.c.l.b16 %v441
    %v595 = vunpack.c.h.b16 %v441
    %v596 = vunpack.c.l.b16 %v442
    %v597 = vunpack.c.l.b16 %v443
    %v598 = vunpack.c.h.b16 %v443
    %v599 = vunpack.c.l.b16 %v444
    %v600 = vunpack.c.l.b16 %v445
    %v601 = vunpack.c.h.b16 %v445
    %v602 = vunpack.c.l.b16 %v446
    %v603 = vunpack.c.l.b16 %v447
    %v604 = vunpack.c.h.b16 %v447
    %v605 = vunpack.c.l.b16 %v448
    %v606 = vunpack.c.l.b16 %v449
    %v607 = vunpack.c.h.b16 %v449
    %v608 = vunpack.c.l.b16 %v450
    %v609 = vunpack.c.l.b16 %v451
    %v610 = vunpack.c.h.b16 %v451
    %v611 = vunpack.c.l.b16 %v452
    %v612 = vunpack.c.l.b16 %v453
    %v613 = vunpack.c.h.b16 %v453
    %v614 = vunpack.c.l.b16 %v454
    %v615 = vunpack.c.l.b16 %v455
    %v616 = vunpack.c.h.b16 %v455
    %v617 = vunpack.c.l.b16 %v456
    %v618 = vunpack.c.l.b16 %v457
    %v619 = vunpack.c.h.b16 %v457
    %v620 = vunpack.c.l.b16 %v458
    %v621 = vunpack.c.l.b16 %v459
    %v622 = vunpack.c.h.b16 %v459
    %v623 = vunpack.c.l.b16 %v460
    %v624 = vunpack.c.l.b16 %v461
    %v625 = vunpack.c.h.b16 %v461
    %v626 = vunpack.c.l.b16 %v462
    %v627 = vunpack.c.l.b16 %v463
    %v628 = vunpack.c.h.b16 %v463
    %v629 = vunpack.c.l.b16 %v464
    %v630 = vunpack.c.l.b16 %v465
    %v631 = vunpack.c.h.b16 %v465
    %v632 = vunpack.c.l.b16 %v466
    %v633 = vunpack.c.l.b16 %v467
    %v634 = vunpack.c.h.b16 %v467
    %v635 = vunpack.c.l.b16 %v468
    %v636 = vunpack.c.l.b16 %v469
    %v637 = vunpack.c.h.b16 %v469
    %v638 = vunpack.c.l.b16 %v470
    %v639 = vunpack.c.l.b16 %v471
    %v640 = vunpack.c.h.b16 %v471
    %v641 = vunpack.c.l.b16 %v472
    %v642 = vunpack.c.l.b16 %v473
    %v643 = vunpack.c.h.b16 %v473
    %v644 = vunpack.c.l.b16 %v474
    %v645 = vunpack.c.l.b16 %v475
    %v646 = vunpack.c.h.b16 %v475
    %v647 = vunpack.c.l.b16 %v476
    %v648 = vunpack.c.l.b16 %v477
    %v649 = vunpack.c.h.b16 %v477
    %v650 = vunpack.c.l.b16 %v478
    %v651 = vunpack.c.l.b16 %v479
    %v652 = vunpack.c.h.b16 %v479
    %v653 = vunpack.c.l.b16 %v480
    %v654 = vunpack.c.l.b16 %v481
    %v655 = vunpack.c.h.b16 %v481
    %v656 = vunpack.c.l.b16 %v482
    %v657 = vunpack.c.l.b16 %v483
    %v658 = vunpack.c.h.b16 %v483
    %v659 = vunpack.c.l.b16 %v484
    %v660 = vunpack.c.l.b16 %v485
    %v661 = vunpack.c.h.b16 %v485
    %v662 = vunpack.c.l.b16 %v486
    %v663 = vunpack.c.l.b16 %v487
    %v664 = vunpack.c.h.b16 %v487
    %v665 = vunpack.c.l.b16 %v488
    %v666 = vpack.c.b16 %v573, %v570
    %v667 = vpack.c.b16 %v574, %v571
    %v668 = vpack.c.b16 %v575, %v572
    %v669 = vpack.c.b16 %v579, %v576
    %v670 = vpack.c.b16 %v580, %v577
    %v671 = vpack.c.b16 %v581, %v578
    %v672 = vpack.c.b16 %v585, %v582
    %v673 = vpack.c.b16 %v586, %v583
    %v674 = vpack.c.b16 %v587, %v584
    %v675 = vpack.c.b16 %v591, %v588
    %v676 = vpack.c.b16 %v592, %v589
    %v677 = vpack.c.b16 %v593, %v590
    %v678 = vpack.c.b16 %v597, %v594
    %v679 = vpack.c.b16 %v598, %v595
    %v680 = vpack.c.b16 %v599, %v596
    %v681 = vpack.c.b16 %v603, %v600
    %v682 = vpack.c.b16 %v604, %v601
    %v683 = vpack.c.b16 %v605, %v602
    %v684 = vpack.c.b16 %v609, %v606
    %v685 = vpack.c.b16 %v610, %v607
    %v686 = vpack.c.b16 %v611, %v608
    %v687 = vpack.c.b16 %v615, %v612
    %v688 = vpack.c.b16 %v616, %v613
    %v689 = vpack.c.b16 %v617, %v614
    %v690 = vpack.c.b16 %v621, %v618
    %v691 = vpack.c.b16 %v622, %v619
    %v692 = vpack.c.b16 %v623, %v620
    %v693 = vpack.c.b16 %v627, %v624
    %v694 = vpack.c.b16 %v628, %v625
    %v695 = vpack.c.b16 %v629, %v626
    %v696 = vpack.c.b16 %v633, %v630
    %v697 = vpack.c.b16 %v634, %v631
    %v698 = vpack.c.b16 %v635, %v632
    %v699 = vpack.c.b16 %v639, %v636
    %v700 = vpack.c.b16 %v640, %v637
    %v701 = vpack.c.b16 %v641, %v638
    %v702 = vpack.c.b16 %v645, %v642
    %v703 = vpack.c.b16 %v646, %v643
    %v704 = vpack.c.b16 %v647, %v644
    %v705 = vpack.c.b16 %v651, %v648
    %v706 = vpack.c.b16 %v652, %v649
    %v707 = vpack.c.b16 %v653, %v650
    %v708 = vpack.c.b16 %v657, %v654
    %v709 = vpack.c.b16 %v658, %v655
    %v710 = vpack.c.b16 %v659, %v656
    %v711 = vpack.c.b16 %v663, %v660
    %v712 = vpack.c.b16 %v664, %v661
    %v713 = vpack.c.b16 %v665, %v662
    %762 = vmatprep.subr.bf16.mxu0 %v667
    %763 = vmatpush1.bf16.msra.mxu0 %v666
    %764 = vmatprep.subr.bf16.mxu0 %v670
    %765 = vmatpush1.bf16.msra.mxu0 %v669
    %766 = vmatprep.subr.bf16.mxu0 %v673
    %767 = vmatpush1.bf16.msra.mxu0 %v672
    %768 = vmatprep.subr.bf16.mxu0 %v676
    %769 = vmatpush1.bf16.msra.mxu0 %v675
    %770 = vmatprep.subr.bf16.mxu0 %v679
    %771 = vmatpush1.bf16.msra.mxu0 %v678
    %772 = vmatprep.subr.bf16.mxu0 %v682
    %773 = vmatpush1.bf16.msra.mxu0 %v681
    %774 = vmatprep.subr.bf16.mxu0 %v685
    %775 = vmatpush1.bf16.msra.mxu0 %v684
    %776 = vmatprep.subr.bf16.mxu0 %v688
    %777 = vmatpush1.bf16.msra.mxu0 %v687
    %778 = vmatprep.subr.bf16.mxu0 %v691
    %779 = vmatpush1.bf16.msra.mxu0 %v690
    %780 = vmatprep.subr.bf16.mxu0 %v694
    %781 = vmatpush1.bf16.msra.mxu0 %v693
    %782 = vmatprep.subr.bf16.mxu0 %v697
    %783 = vmatpush1.bf16.msra.mxu0 %v696
    %784 = vmatprep.subr.bf16.mxu0 %v700
    %785 = vmatpush1.bf16.msra.mxu0 %v699
    %786 = vmatprep.subr.bf16.mxu0 %v703
    %787 = vmatpush1.bf16.msra.mxu0 %v702
    %788 = vmatprep.subr.bf16.mxu0 %v706
    %789 = vmatpush1.bf16.msra.mxu0 %v705
    %790 = vmatprep.subr.bf16.mxu0 %v709
    %791 = vmatpush1.bf16.msra.mxu0 %v708
    %792 = vmatprep.subr.bf16.mxu0 %v712
    %793 = vmatpush1.bf16.msra.mxu0 %v711
    %794 = vmatprep.mubr.bf16.mxu0 %v424
    %795 = vmatmul.mubr.bf16.gmra.mrb[0].mxu0 %v423
    %v796 = vpop.f32.mrb[0].mxu0
    %v797 = vadd.f32 %v494, %v796
    %v798 = vpop.f32.mrb[0].mxu0
    %v799 = vadd.f32 %v498, %v798
    %v800 = vpop.f32.mrb[0].mxu0
    %v801 = vpop.f32.mrb[0].mxu0
    %802 = vdwg.mxu0
    %803 = vmatprep.subr.bf16.mxu0 0
    %804 = vmatpush1.bf16.msra.mxu0 %v668
    %805 = vmatprep.subr.bf16.mxu0 0
    %806 = vmatpush1.bf16.msra.mxu0 %v671
    %807 = vmatprep.subr.bf16.mxu0 0
    %808 = vmatpush1.bf16.msra.mxu0 %v674
    %809 = vmatprep.subr.bf16.mxu0 0
    %810 = vmatpush1.bf16.msra.mxu0 %v677
    %811 = vmatprep.subr.bf16.mxu0 0
    %812 = vmatpush1.bf16.msra.mxu0 %v680
    %813 = vmatprep.subr.bf16.mxu0 0
    %814 = vmatpush1.bf16.msra.mxu0 %v683
    %815 = vmatprep.subr.bf16.mxu0 0
    %816 = vmatpush1.bf16.msra.mxu0 %v686
    %817 = vmatprep.subr.bf16.mxu0 0
    %818 = vmatpush1.bf16.msra.mxu0 %v689
    %819 = vmatprep.subr.bf16.mxu0 0
    %820 = vmatpush1.bf16.msra.mxu0 %v692
    %821 = vmatprep.subr.bf16.mxu0 0
    %822 = vmatpush1.bf16.msra.mxu0 %v695
    %823 = vmatprep.subr.bf16.mxu0 0
    %824 = vmatpush1.bf16.msra.mxu0 %v698
    %825 = vmatprep.subr.bf16.mxu0 0
    %826 = vmatpush1.bf16.msra.mxu0 %v701
    %827 = vmatprep.subr.bf16.mxu0 0
    %828 = vmatpush1.bf16.msra.mxu0 %v704
    %829 = vmatprep.subr.bf16.mxu0 0
    %830 = vmatpush1.bf16.msra.mxu0 %v707
    %831 = vmatprep.subr.bf16.mxu0 0
    %832 = vmatpush1.bf16.msra.mxu0 %v710
    %833 = vmatprep.subr.bf16.mxu0 0
    %834 = vmatpush1.bf16.msra.mxu0 %v713
    %835 = vmatprep.mubr.bf16.mxu0 %v424
    %836 = vmatmul.mubr.bf16.gmra.mrb[0].mxu0 %v423
    %v837 = vpop.f32.mrb[0].mxu0
    %v838 = vadd.f32 %v502, %v837
    %v839 = vpop.f32.mrb[0].mxu0
    %v840 = vpop.f32.mrb[0].mxu0
    %v841 = vpop.f32.mrb[0].mxu0
    %842 = vdwg.mxu0
    %843 = vst [vmem:[#allocation2] sm:$0xff] %v797
    %844 = vst [vmem:[#allocation2 + $0x8] sm:$0xff] %v799
    %845 = vst.msk [vmem:[#allocation2 + $0x10] sm:$0xff] %vm335, %v838
    // Predicated region
    $region26: #{tpu_custom_call.1} parent=1 // pred_check
      _
    $region27: #{tpu_custom_call.1} parent=1 // pred_check_branch
      %847 = sbr.rel (0) target = $region29
    $region28: #{tpu_custom_call.1} parent=1 // pred_region
      %s849 = ssub.s32 384, 384
      %850 = vsyncadd [#allocation3], %s849
      %s852 = sshll.u32 [#allocation2], 4
      %s853 = int_to_ptr.vmem [resolvable:$true] %s852
      %855 = dma.vmem_to_hbm [thread:$0]  %s853, 384, %s6, [#allocation3]
    $region29: #{tpu_custom_call.1} parent=1 // pred_fallthru
      _
    // Predicated region
    $region30: #{tpu_custom_call.1} parent=1 // pred_check
      _
    $region31: #{tpu_custom_call.1} parent=1 // pred_check_branch
      %857 = sbr.rel (0) target = $region33
    $region32: #{tpu_custom_call.1} parent=1 // pred_region
      %858 = dma.done [#allocation3], 384
    $region33: #{tpu_custom_call.1} parent=1 // pred_fallthru
      _
    %859 = vsyncpa [#allocation3], 1

</llo_original>
